<compile_context>
chip_gen: v6e
topology: v6e:2x2x1
jax: 0.10.0
libtpu: 0.0.40
codegen_flags: <defaults>
</compile_context>

<pallas_src>
import functools

import jax
import jax.numpy as jnp
from jax.experimental import pallas as pl
from jax.experimental.pallas import tpu as pltpu


def ann_kernel(xt_ref, w1_ref, b1_ref, w2_ref, b2_ref, o_ref):
    # Layer 1 on the MXU, feature-major: (H, K) @ (K, TB) -> (H, TB).
    # Batch sits on the lane axis, so bias-add / tanh are plain VPU/EUP work.
    h_t = jnp.tanh(
        jnp.dot(w1_ref[...], xt_ref[...], preferred_element_type=jnp.float32)
        + b1_ref[...]
    )
    # Layer 2 (N_out = 1): single MXU pass (1, H) @ (H, TB) -> (1, TB).
    # Result is already the lane-dense output slab -> unmasked store, no XLU work.
    y = jnp.dot(w2_ref[...], h_t, preferred_element_type=jnp.float32) + b2_ref[0, 0]
    o_ref[...] = y.astype(o_ref.dtype)


def _pick_batch_tile(B: int, tb: int) -> int:
    """Pick a lane-aligned batch tile (batch lives on the lane axis)."""
    if B > tb:
        return tb  # large batch: fixed 128-aligned tile, grid >= 2
    if B >= 2048:
        # Medium batch: force >= 2 grid steps so both v7x TensorCores get work.
        half = pl.cdiv(B, 2)
        return pl.cdiv(half, 128) * 128
    return B  # small batch: single full-array tile (block == full dims)


@functools.partial(jax.jit, static_argnames=("tb",))
def ann_forward(x, w1, b1, w2, b2, *, tb=8192):
    """Equivalent to PyTorch ANN.forward: tanh(x @ w1.T + b1) @ w2.T + b2 -> (B, 1).

    Parameters use the PyTorch nn.Linear layout:
      w1: (hidden, input_dim)   b1: (hidden,)
      w2: (1, hidden)           b2: (1,) (or scalar)
    """
    B, input_dim = x.shape
    hidden = w1.shape[0]

    # Feature-major input: batch on the lane axis removes the 8x lane padding a
    # (TB, 16) block would incur and makes the (1, TB) output natively lane-dense.
    # NOTE: ideally the producer hands us x already feature-major; this is one
    # cheap transpose of the (B, input_dim) input done once in the wrapper.
    x_t = x.T                                     # (input_dim, B)
    b1_col = b1.reshape(hidden, 1)                # broadcasts over lanes in-kernel
    b2_s = jnp.asarray(b2, jnp.float32).reshape(1, 1)

    TB = _pick_batch_tile(B, tb)
    grid = (pl.cdiv(B, TB),)                      # no jnp.pad: Pallas clips the
                                                  # ragged last block on writeback

    cost = pl.CostEstimate(
        flops=2 * B * hidden * (input_dim + 1),
        transcendentals=B * hidden,
        bytes_accessed=(B * input_dim + B + hidden * (input_dim + 2) + 1) * 4,
    )

    out = pl.pallas_call(
        ann_kernel,
        out_shape=jax.ShapeDtypeStruct((1, B), jnp.float32),
        grid=grid,
        in_specs=[
            pl.BlockSpec((input_dim, TB), lambda i: (0, i)),       # xT: tiled over B
            pl.BlockSpec((hidden, input_dim), lambda i: (0, 0)),   # W1: VMEM resident
            pl.BlockSpec((hidden, 1), lambda i: (0, 0)),           # b1: VMEM resident
            pl.BlockSpec((1, hidden), lambda i: (0, 0)),           # W2: VMEM resident
            pl.BlockSpec((1, 1), lambda i: (0, 0),
                         memory_space=pltpu.MemorySpace.SMEM),     # b2: SMEM scalar
        ],
        out_specs=pl.BlockSpec((1, TB), lambda i: (0, i)),         # lane-dense output
        compiler_params=pltpu.CompilerParams(
            dimension_semantics=("parallel",),
            # Tiles are small even at TB=8192 (xT block ~512 KiB double-buffered);
            # 32 MiB is safe on v5e/v6e/v7x scoped-VMEM budgets.
            vmem_limit_bytes=32 * 1024 * 1024,
        ),
        cost_estimate=cost,
    )(x_t, w1, b1_col, w2, b2_s)

    # (1, B) lane-dense slab -> (B, 1) to match the PyTorch module's output shape.
    return out.reshape(B, 1)


if __name__ == "__main__":
    # Small shapes consistent with the module: batch=8, input_dim=16, hidden=32.
    B, input_dim, hidden_dim = 8, 16, 32

    key = jax.random.PRNGKey(0)
    kx, kw1, kb1, kw2, kb2 = jax.random.split(key, 5)

    x = jax.random.normal(kx, (B, input_dim), dtype=jnp.float32)

    # Deterministic parameter init in PyTorch layout (uniform +-1/sqrt(fan_in)).
    lim1 = 1.0 / jnp.sqrt(float(input_dim))
    w1 = jax.random.uniform(kw1, (hidden_dim, input_dim), jnp.float32, -lim1, lim1)
    b1 = jax.random.uniform(kb1, (hidden_dim,), jnp.float32, -lim1, lim1)

    lim2 = 1.0 / jnp.sqrt(float(hidden_dim))
    w2 = jax.random.uniform(kw2, (1, hidden_dim), jnp.float32, -lim2, lim2)
    b2 = jax.random.uniform(kb2, (1,), jnp.float32, -lim2, lim2)

    def ref_fn(xv):
        return jnp.tanh(xv @ w1.T + b1) @ w2.T + b2

    # --- small batch: single full-array tile ---
    out = jax.block_until_ready(ann_forward(x, w1, b1, w2, b2))
    assert out.shape == (B, 1)
    assert jnp.allclose(out, ref_fn(x), atol=1e-5, rtol=1e-4)

    # --- medium batch (>=2048): >=2 lane-aligned tiles (both v7x TCs), ragged tail ---
    B_med = 3000
    x_med = jax.random.normal(jax.random.PRNGKey(1), (B_med, input_dim), jnp.float32)
    out_med = jax.block_until_ready(ann_forward(x_med, w1, b1, w2, b2))
    assert out_med.shape == (B_med, 1)
    assert jnp.allclose(out_med, ref_fn(x_med), atol=1e-5, rtol=1e-4)

    # --- large batch: multi-step grid at TB=8192 with a ragged tail (no jnp.pad) ---
    B_big = 20000
    x_big = jax.random.normal(jax.random.PRNGKey(2), (B_big, input_dim), jnp.float32)
    out_big = jax.block_until_ready(ann_forward(x_big, w1, b1, w2, b2))
    assert out_big.shape == (B_big, 1)
    assert jnp.allclose(out_big, ref_fn(x_big), atol=1e-5, rtol=1e-4)

    print("KERNEL_OK")
</pallas_src>

<mosaic_0001>
module attributes {stable_mosaic.version = 11 : i64} {
  func.func @ann_kernel(%arg0: i32, %arg1: memref<16x8xf32, #tpu.memory_space<vmem>>, %arg2: memref<32x16xf32, #tpu.memory_space<vmem>>, %arg3: memref<32x1xf32, #tpu.memory_space<vmem>>, %arg4: memref<1x32xf32, #tpu.memory_space<vmem>>, %arg5: memref<1x1xf32, #tpu.memory_space<smem>>, %arg6: memref<1x8xf32, #tpu.memory_space<vmem>>) attributes {dimension_semantics = [#tpu.dimension_semantics<parallel>], iteration_bounds = array<i64: 1>, scalar_prefetch = 0 : i64, scratch_operands = 0 : i64, tpu.core_type = #tpu.core_type<tc>, window_params = [{transform_indices = @transform_0, window_bounds = array<i64: 16, 8>}, {pipeline_mode = #tpu.pipeline_mode<synchronous>, transform_indices = @transform_1, window_bounds = array<i64: 32, 16>}, {pipeline_mode = #tpu.pipeline_mode<synchronous>, transform_indices = @transform_2, window_bounds = array<i64: 32, 1>}, {pipeline_mode = #tpu.pipeline_mode<synchronous>, transform_indices = @transform_3, window_bounds = array<i64: 1, 32>}, {transform_indices = @transform_4, window_bounds = array<i64: 1, 1>}, {transform_indices = @transform_5, window_bounds = array<i64: 1, 8>}]} {
    %c0 = arith.constant 0 : index
    %c0_0 = arith.constant 0 : index
    %0 = vector.load %arg2[%c0, %c0_0] : memref<32x16xf32, #tpu.memory_space<vmem>>, vector<32x16xf32>
    %c0_1 = arith.constant 0 : index
    %c0_2 = arith.constant 0 : index
    %1 = vector.load %arg1[%c0_1, %c0_2] : memref<16x8xf32, #tpu.memory_space<vmem>>, vector<16x8xf32>
    %cst = arith.constant dense<0.000000e+00> : vector<32x8xf32>
    %2 = tpu.matmul %0, %1, %cst {dimension_numbers = #tpu.dot_dimension_numbers<[1], [0], [0], [1], [0, 0, 1, 1], [], []>} : vector<32x16xf32>, vector<16x8xf32>, vector<32x8xf32> -> vector<32x8xf32>
    %c0_3 = arith.constant 0 : index
    %c0_4 = arith.constant 0 : index
    %3 = vector.load %arg3[%c0_3, %c0_4] : memref<32x1xf32, #tpu.memory_space<vmem>>, vector<32x1xf32>
    %4 = vector.broadcast %3 : vector<32x1xf32> to vector<32x8xf32>
    %5 = arith.addf %2, %4 : vector<32x8xf32>
    %6 = math.tanh %5 : vector<32x8xf32>
    %c0_5 = arith.constant 0 : index
    %c0_6 = arith.constant 0 : index
    %7 = vector.load %arg4[%c0_5, %c0_6] : memref<1x32xf32, #tpu.memory_space<vmem>>, vector<1x32xf32>
    %cst_7 = arith.constant dense<0.000000e+00> : vector<1x8xf32>
    %8 = tpu.matmul %7, %6, %cst_7 {dimension_numbers = #tpu.dot_dimension_numbers<[1], [0], [0], [1], [0, 0, 1, 1], [], []>} : vector<1x32xf32>, vector<32x8xf32>, vector<1x8xf32> -> vector<1x8xf32>
    %c0_8 = arith.constant 0 : index
    %c0_9 = arith.constant 0 : index
    %9 = memref.load %arg5[%c0_8, %c0_9] : memref<1x1xf32, #tpu.memory_space<smem>>
    %10 = vector.broadcast %9 : f32 to vector<1x8xf32>
    %11 = arith.addf %8, %10 : vector<1x8xf32>
    %c0_10 = arith.constant 0 : index
    %c0_11 = arith.constant 0 : index
    %12 = vector.load %arg6[%c0_10, %c0_11] : memref<1x8xf32, #tpu.memory_space<vmem>>, vector<1x8xf32>
    tpu.vector_store %arg6[%c0_10, %c0_11], %11 {strides = array<i32>} : memref<1x8xf32, #tpu.memory_space<vmem>>, vector<1x8xf32>,
    return
  }
  func.func @transform_0(%arg0: i32) -> (i32, i32) {
    %c0_i32 = arith.constant 0 : i32
    %c0_i32_0 = arith.constant 0 : i32
    return %c0_i32, %arg0 : i32, i32
  }
  func.func @transform_1(%arg0: i32) -> (i32, i32) {
    %c0_i32 = arith.constant 0 : i32
    %c0_i32_0 = arith.constant 0 : i32
    %c0_i32_1 = arith.constant 0 : i32
    return %c0_i32, %c0_i32_0 : i32, i32
  }
  func.func @transform_2(%arg0: i32) -> (i32, i32) {
    %c0_i32 = arith.constant 0 : i32
    %c0_i32_0 = arith.constant 0 : i32
    %c0_i32_1 = arith.constant 0 : i32
    return %c0_i32, %c0_i32_0 : i32, i32
  }
  func.func @transform_3(%arg0: i32) -> (i32, i32) {
    %c0_i32 = arith.constant 0 : i32
    %c0_i32_0 = arith.constant 0 : i32
    %c0_i32_1 = arith.constant 0 : i32
    return %c0_i32, %c0_i32_0 : i32, i32
  }
  func.func @transform_4(%arg0: i32) -> (i32, i32) {
    %c0_i32 = arith.constant 0 : i32
    %c0_i32_0 = arith.constant 0 : i32
    %c0_i32_1 = arith.constant 0 : i32
    return %c0_i32, %c0_i32_0 : i32, i32
  }
  func.func @transform_5(%arg0: i32) -> (i32, i32) {
    %c0_i32 = arith.constant 0 : i32
    %c0_i32_0 = arith.constant 0 : i32
    return %c0_i32, %arg0 : i32, i32
  }
}

</mosaic_0001>

<llo_original>
// kernel: ann_forward.1
$region0: #{ann_forward.1}
  #allocation0 [shape = 'u32[]', space=smem, size = 0x4, offset = 0x4, fixed_abs, tag = 'smem constant byte address 0x4 - core index']
  #allocation1 [shape = 'u32[144,128]{1,0:T(1,128)}', space=vmem, size = 0x12000, scoped, tag = 'internal scratch']
  #allocation2 [shape = 'f32[1,1]{1,0:T(1,128)S(6)}', space=smem, size = 0x200, scoped, tag = 'scoped memory for ann_forward.1']
  %s0 = inlined_call_operand.vmem [shape: f32[16,8], index: 0, kind: input, shape index: {}]
  %s1 = inlined_call_operand.vmem [shape: f32[32,16], index: 1, kind: input, shape index: {}]
  %s2 = inlined_call_operand.vmem [shape: f32[32,1], index: 2, kind: input, shape index: {}]
  %s3 = inlined_call_operand.vmem [shape: f32[1,32], index: 3, kind: input, shape index: {}]
  %s4 = inlined_call_operand.<no memory space> [shape: f32[1,1], index: 4, kind: input, shape index: {}]
  %s5 = inlined_call_operand.hbm [shape: f32[1,8], index: 5, kind: output, shape index: {}]
  %s6 = sld [smem:[#allocation0]]
  $region30: #{ann_forward.1} parent=0
    _
  %s8 = ssub.s32 1, %s6
  %s9 = scalar_select 0, %s8, %s6
  %10 = sst [smem:[#allocation2]] %s4
  $region1: #{ann_forward.1} parent=0
    #allocation3 [shape = 'u8[512]{0}', space=vmem, size = 0x400, scoped, tag = 'output window, operand 0, single buffered']
    #allocation4 [shape = 's32[1]{0}', space=sflag, size = 0x4, scoped, tag = 'scoped memory for ann_forward.1']
    %11 = vsyncpa [#allocation4], 0
    // Predicated region
    $region2: #{ann_forward.1} parent=1 // pred_check
      _
    $region3: #{ann_forward.1} parent=1 // pred_check_branch
      %13 = sbr.rel (0) target = $region5
    $region4: #{ann_forward.1} parent=1 // pred_region
      _
    $region5: #{ann_forward.1} parent=1 // pred_fallthru
      _
    // Predicated region
    $region6: #{ann_forward.1} parent=1 // pred_check
      _
    $region7: #{ann_forward.1} parent=1 // pred_check_branch
      %15 = sbr.rel (0) target = $region9
    $region8: #{ann_forward.1} parent=1 // pred_region
      _
    $region9: #{ann_forward.1} parent=1 // pred_fallthru
      _
    // Predicated region
    $region10: #{ann_forward.1} parent=1 // pred_check
      _
    $region11: #{ann_forward.1} parent=1 // pred_check_branch
      %17 = sbr.rel (0) target = $region13
    $region12: #{ann_forward.1} parent=1 // pred_region
      _
    $region13: #{ann_forward.1} parent=1 // pred_fallthru
      _
    // Predicated region
    $region14: #{ann_forward.1} parent=1 // pred_check
      _
    $region15: #{ann_forward.1} parent=1 // pred_check_branch
      %19 = sbr.rel (0) target = $region17
    $region16: #{ann_forward.1} parent=1 // pred_region
      _
    $region17: #{ann_forward.1} parent=1 // pred_fallthru
      _
    // Predicated region
    $region18: #{ann_forward.1} parent=1 // pred_check
      _
    $region19: #{ann_forward.1} parent=1 // pred_check_branch
      %21 = sbr.rel (0) target = $region21
    $region20: #{ann_forward.1} parent=1 // pred_region
      _
    $region21: #{ann_forward.1} parent=1 // pred_fallthru
      _
    %v22 = vld [vmem:[%s1] sm:$0xff]
    %v23 = vld [vmem:[%s1 + $0x8] sm:$0xff]
    %v24 = vld [vmem:[%s1 + $0x10] sm:$0xff]
    %v25 = vld [vmem:[%s1 + $0x18] sm:$0xff]
    %v26 = vld [vmem:[%s0] sm:$0xff]
    %v27 = vld [vmem:[%s0 + $0x8] sm:$0xff]
    %v28 = vld [vmem:[%s2] sm:$0xff]
    %v29 = vld [vmem:[%s2 + $0x8] sm:$0xff]
    %v30 = vld [vmem:[%s2 + $0x10] sm:$0xff]
    %v31 = vld [vmem:[%s2 + $0x18] sm:$0xff]
    %33 = vset.pattern.permute.xlu0 0
    %34 = vperm.xlu0 %33, %v28
    %v35 = vpop.permute.xlu0 %34
    %38 = vset.pattern.permute.xlu0 0
    %39 = vperm.xlu0 %38, %v29
    %v40 = vpop.permute.xlu0 %39
    %43 = vset.pattern.permute.xlu0 0
    %44 = vperm.xlu0 %43, %v30
    %v45 = vpop.permute.xlu0 %44
    %48 = vset.pattern.permute.xlu0 0
    %49 = vperm.xlu0 %48, %v31
    %v50 = vpop.permute.xlu0 %49
    %vm52 = vcmask 130048
    %v54 = vsel %vm52, %v22, 0
    %v57 = vsel %vm52, %v23, 0
    %v60 = vsel %vm52, %v24, 0
    %v63 = vsel %vm52, %v25, 0
    %65 = vmatprep.subr.mxu0 0.0
    %66 = vmatpush1.msra.mxu0 0.0
    %67 = vmatprep.subr.mxu0 0.0
    %68 = vmatpush1.msra.mxu0 0.0
    %69 = vmatprep.subr.mxu0 0.0
    %70 = vmatpush1.msra.mxu0 0.0
    %71 = vmatprep.subr.mxu0 0.0
    %72 = vmatpush1.msra.mxu0 0.0
    %73 = vmatprep.subr.mxu0 0.0
    %74 = vmatpush1.msra.mxu0 0.0
    %75 = vmatprep.subr.mxu0 0.0
    %76 = vmatpush1.msra.mxu0 0.0
    %77 = vmatprep.subr.mxu0 0.0
    %78 = vmatpush1.msra.mxu0 0.0
    %79 = vmatprep.subr.mxu0 0.0
    %80 = vmatpush1.msra.mxu0 0.0
    %81 = vmatprep.subr.mxu0 0.0
    %82 = vmatpush1.msra.mxu0 0.0
    %83 = vmatprep.subr.mxu0 0.0
    %84 = vmatpush1.msra.mxu0 0.0
    %85 = vmatprep.subr.mxu0 0.0
    %86 = vmatpush1.msra.mxu0 0.0
    %87 = vmatprep.subr.mxu0 0.0
    %88 = vmatpush1.msra.mxu0 0.0
    %89 = vmatprep.subr.mxu0 0.0
    %90 = vmatpush1.msra.mxu0 0.0
    %91 = vmatprep.subr.mxu0 0.0
    %92 = vmatpush1.msra.mxu0 0.0
    %93 = vmatprep.subr.mxu0 0.0
    %94 = vmatpush1.msra.mxu0 %v27
    %95 = vmatprep.subr.mxu0 0.0
    %96 = vmatpush1.msra.mxu0 %v26
    %97 = vmatprep.subr.mxu0 0.0
    %98 = vmatpush2.msra.mxu0 0.0
    %99 = vmatprep.subr.mxu0 0.0
    %100 = vmatpush2.msra.mxu0 0.0
    %101 = vmatprep.subr.mxu0 0.0
    %102 = vmatpush2.msra.mxu0 0.0
    %103 = vmatprep.subr.mxu0 0.0
    %104 = vmatpush2.msra.mxu0 0.0
    %105 = vmatprep.subr.mxu0 0.0
    %106 = vmatpush2.msra.mxu0 0.0
    %107 = vmatprep.subr.mxu0 0.0
    %108 = vmatpush2.msra.mxu0 0.0
    %109 = vmatprep.subr.mxu0 0.0
    %110 = vmatpush2.msra.mxu0 0.0
    %111 = vmatprep.subr.mxu0 0.0
    %112 = vmatpush2.msra.mxu0 0.0
    %113 = vmatprep.subr.mxu0 0.0
    %114 = vmatpush2.msra.mxu0 0.0
    %115 = vmatprep.subr.mxu0 0.0
    %116 = vmatpush2.msra.mxu0 0.0
    %117 = vmatprep.subr.mxu0 0.0
    %118 = vmatpush2.msra.mxu0 0.0
    %119 = vmatprep.subr.mxu0 0.0
    %120 = vmatpush2.msra.mxu0 0.0
    %121 = vmatprep.subr.mxu0 0.0
    %122 = vmatpush2.msra.mxu0 0.0
    %123 = vmatprep.subr.mxu0 0.0
    %124 = vmatpush2.msra.mxu0 0.0
    %125 = vmatprep.subr.mxu0 0.0
    %126 = vmatpush2.msra.mxu0 0.0
    %127 = vmatprep.subr.mxu0 0.0
    %128 = vmatpush2.msra.mxu0 0.0
    %129 = vmatprep.mubr.f32.mxu0 0.0
    %130 = vmatmul.mubr.f32.gmra.mxu0 %v54
    %v131 = vpop.f32.mrf.mxu0
    %v132 = vadd.f32 %v35, %v131
    %v133 = vpop.f32.mrf.mxu0
    %134 = vmatprep.mubr.f32.mxu0 0.0
    %135 = vmatmul.mubr.f32.gmra.mxu0 %v57
    %v136 = vpop.f32.mrf.mxu0
    %v137 = vadd.f32 %v40, %v136
    %v138 = vpop.f32.mrf.mxu0
    %139 = vmatprep.mubr.f32.mxu0 0.0
    %140 = vmatmul.mubr.f32.gmra.mxu0 %v60
    %v141 = vpop.f32.mrf.mxu0
    %v142 = vadd.f32 %v45, %v141
    %v143 = vpop.f32.mrf.mxu0
    %144 = vmatprep.mubr.f32.mxu0 0.0
    %145 = vmatmul.mubr.f32.gmra.mxu0 %v63
    %v146 = vpop.f32.mrf.mxu0
    %v147 = vadd.f32 %v50, %v146
    %v148 = vpop.f32.mrf.mxu0
    %149 = vdwg.mxu0
    %v150 = vtanh.pop %v132
    %v151 = vtanh.pop %v137
    %v152 = vtanh.pop %v142
    %v153 = vtanh.pop %v147
    %v154 = vld [vmem:[%s3] sm:$0x1]
    %s155 = sld [smem:[#allocation2]]
    %v156 = vstv %s155
    %vm157 = vcmask 261120
    %v159 = vsel %vm157, %v154, 0
    %161 = vmatprep.subr.mxu0 0.0
    %162 = vmatpush1.msra.mxu0 0.0
    %163 = vmatprep.subr.mxu0 0.0
    %164 = vmatpush1.msra.mxu0 0.0
    %165 = vmatprep.subr.mxu0 0.0
    %166 = vmatpush1.msra.mxu0 0.0
    %167 = vmatprep.subr.mxu0 0.0
    %168 = vmatpush1.msra.mxu0 0.0
    %169 = vmatprep.subr.mxu0 0.0
    %170 = vmatpush1.msra.mxu0 0.0
    %171 = vmatprep.subr.mxu0 0.0
    %172 = vmatpush1.msra.mxu0 0.0
    %173 = vmatprep.subr.mxu0 0.0
    %174 = vmatpush1.msra.mxu0 0.0
    %175 = vmatprep.subr.mxu0 0.0
    %176 = vmatpush1.msra.mxu0 0.0
    %177 = vmatprep.subr.mxu0 0.0
    %178 = vmatpush1.msra.mxu0 0.0
    %179 = vmatprep.subr.mxu0 0.0
    %180 = vmatpush1.msra.mxu0 0.0
    %181 = vmatprep.subr.mxu0 0.0
    %182 = vmatpush1.msra.mxu0 0.0
    %183 = vmatprep.subr.mxu0 0.0
    %184 = vmatpush1.msra.mxu0 0.0
    %185 = vmatprep.subr.mxu0 0.0
    %186 = vmatpush1.msra.mxu0 %v153
    %187 = vmatprep.subr.mxu0 0.0
    %188 = vmatpush1.msra.mxu0 %v152
    %189 = vmatprep.subr.mxu0 0.0
    %190 = vmatpush1.msra.mxu0 %v151
    %191 = vmatprep.subr.mxu0 0.0
    %192 = vmatpush1.msra.mxu0 %v150
    %193 = vmatprep.subr.mxu0 0.0
    %194 = vmatpush2.msra.mxu0 0.0
    %195 = vmatprep.subr.mxu0 0.0
    %196 = vmatpush2.msra.mxu0 0.0
    %197 = vmatprep.subr.mxu0 0.0
    %198 = vmatpush2.msra.mxu0 0.0
    %199 = vmatprep.subr.mxu0 0.0
    %200 = vmatpush2.msra.mxu0 0.0
    %201 = vmatprep.subr.mxu0 0.0
    %202 = vmatpush2.msra.mxu0 0.0
    %203 = vmatprep.subr.mxu0 0.0
    %204 = vmatpush2.msra.mxu0 0.0
    %205 = vmatprep.subr.mxu0 0.0
    %206 = vmatpush2.msra.mxu0 0.0
    %207 = vmatprep.subr.mxu0 0.0
    %208 = vmatpush2.msra.mxu0 0.0
    %209 = vmatprep.subr.mxu0 0.0
    %210 = vmatpush2.msra.mxu0 0.0
    %211 = vmatprep.subr.mxu0 0.0
    %212 = vmatpush2.msra.mxu0 0.0
    %213 = vmatprep.subr.mxu0 0.0
    %214 = vmatpush2.msra.mxu0 0.0
    %215 = vmatprep.subr.mxu0 0.0
    %216 = vmatpush2.msra.mxu0 0.0
    %217 = vmatprep.subr.mxu0 0.0
    %218 = vmatpush2.msra.mxu0 0.0
    %219 = vmatprep.subr.mxu0 0.0
    %220 = vmatpush2.msra.mxu0 0.0
    %221 = vmatprep.subr.mxu0 0.0
    %222 = vmatpush2.msra.mxu0 0.0
    %223 = vmatprep.subr.mxu0 0.0
    %224 = vmatpush2.msra.mxu0 0.0
    %225 = vmatprep.mubr.f32.mxu0 0.0
    %226 = vmatmul.mubr.f32.gmra.mxu0 %v159
    %v227 = vpop.f32.mrf.mxu0
    %v228 = vadd.f32 %v156, %v227
    %v229 = vpop.f32.mrf.mxu0
    %230 = vdwg.mxu0
    %vm231 = vcmask 57344
    %232 = vst.msk [vmem:[#allocation3] sm:$0x1] %vm231, %v228
    // Predicated region
    $region22: #{ann_forward.1} parent=1 // pred_check
      _
    $region23: #{ann_forward.1} parent=1 // pred_check_branch
      %234 = sbr.rel (0) target = $region25
    $region24: #{ann_forward.1} parent=1 // pred_region
      %s236 = ssub.s32 16, 16
      %237 = vsyncadd [#allocation4], %s236
      %s239 = sshll.u32 [#allocation3], 4
      %s240 = int_to_ptr.vmem [resolvable:$true] %s239
      %242 = dma.vmem_to_hbm [thread:$0]  %s240, 16, %s5, [#allocation4]
    $region25: #{ann_forward.1} parent=1 // pred_fallthru
      _
    // Predicated region
    $region26: #{ann_forward.1} parent=1 // pred_check
      _
    $region27: #{ann_forward.1} parent=1 // pred_check_branch
      %244 = sbr.rel (0) target = $region29
    $region28: #{ann_forward.1} parent=1 // pred_region
      %245 = dma.done [#allocation4], 16
    $region29: #{ann_forward.1} parent=1 // pred_fallthru
      _
    %246 = vsyncpa [#allocation4], 1

</llo_original>
